<compile_context>
chip_gen: v7x
topology: tpu7x:2x2x1
jax: 0.10.0
libtpu: 0.0.40
codegen_flags: <defaults>
</compile_context>

<pallas_src>
import jax
import jax.numpy as jnp
from jax.experimental import pallas as pl
from jax.experimental.pallas import tpu as pltpu

W0 = 30.0  # Sine frequency of the Siren layers


def inr_kernel(x_ref, w1_ref, b1_ref, w2_ref, b2_ref, w3_ref, b3_ref, o_ref):
    # Points-on-lanes layout: every intermediate is (hidden, tile) == dense vregs.
    x = x_ref[...]                                                       # (in_dim, tile)
    # w0 is already folded into w1/b1 and w2/b2 by the wrapper.
    h = jnp.sin(jnp.dot(w1_ref[...], x, preferred_element_type=jnp.float32)
                + b1_ref[...])                                           # (hidden, tile)
    h = jnp.sin(jnp.dot(w2_ref[...], h, preferred_element_type=jnp.float32)
                + b2_ref[...])                                           # (hidden, tile)
    o = jnp.dot(w3_ref[...], h, preferred_element_type=jnp.float32) + b3_ref[...]
    o_ref[...] = o.astype(o_ref.dtype)                                   # (out_ch, tile)


def _round_up(n, m):
    return ((n + m - 1) // m) * m


def inr_forward(x, params, *, tile=2048):
    """Fused SIREN-MLP forward.

    x: (N, in_dim) float32 coordinates.
    params: PyTorch-layout params {w1:(H,in), b1:(H,), w2:(H,H), b2:(H,),
                                   w3:(out,H), b3:(out,)}.
    Returns (N, out_ch) float32.
    """
    N, in_dim = x.shape
    hidden = params["w1"].shape[0]
    out_ch = params["w3"].shape[0]
    assert tile % 128 == 0, "tile must be a multiple of 128 (lane width)"

    # Effective tile: 128-aligned, no bigger than the (padded) problem.
    eff_tile = min(tile, _round_up(N, 128))
    n_pad = _round_up(N, eff_tile)

    # Transpose to points-on-lanes and zero-pad the tail (discarded at the end).
    xt = jnp.zeros((in_dim, n_pad), jnp.float32).at[:, :N].set(x.T.astype(jnp.float32))

    # Fold the sine frequency into the Siren weights/biases; reshape biases to
    # (dim, 1) so they broadcast across lanes inside the kernel.
    w1 = (W0 * params["w1"]).astype(jnp.float32)
    b1 = (W0 * params["b1"]).reshape(hidden, 1).astype(jnp.float32)
    w2 = (W0 * params["w2"]).astype(jnp.float32)
    b2 = (W0 * params["b2"]).reshape(hidden, 1).astype(jnp.float32)
    w3 = params["w3"].astype(jnp.float32)
    b3 = params["b3"].reshape(out_ch, 1).astype(jnp.float32)

    full = lambda shape: pl.BlockSpec(shape, lambda i: (0, 0))  # grid-invariant block
    out_t = pl.pallas_call(
        inr_kernel,
        out_shape=jax.ShapeDtypeStruct((out_ch, n_pad), jnp.float32),
        grid_spec=pltpu.PrefetchScalarGridSpec(
            num_scalar_prefetch=0,
            grid=(n_pad // eff_tile,),
            in_specs=[
                pl.BlockSpec((in_dim, eff_tile), lambda i: (0, i)),   # x tile
                full((hidden, in_dim)),                               # w0*W1
                full((hidden, 1)),                                    # w0*b1
                full((hidden, hidden)),                               # w0*W2
                full((hidden, 1)),                                    # w0*b2
                full((out_ch, hidden)),                               # W3
                full((out_ch, 1)),                                    # b3
            ],
            out_specs=pl.BlockSpec((out_ch, eff_tile), lambda i: (0, i)),
        ),
        compiler_params=pltpu.CompilerParams(
            dimension_semantics=("parallel",)),
    )(xt, w1, b1, w2, b2, w3, b3)

    return out_t[:, :N].T  # back to (N, out_ch)


def inr_reference(x, params):
    h = jnp.sin(W0 * (x @ params["w1"].T + params["b1"]))
    h = jnp.sin(W0 * (h @ params["w2"].T + params["b2"]))
    return h @ params["w3"].T + params["b3"]


def init_params(key, in_dim=2, n_layers=3, up_scale=4, out_channels=1):
    # Deterministic synthetic init (the PyTorch module zero-inits Siren weights,
    # which is degenerate; we use small uniform weights instead, same shapes,
    # PyTorch layout: weight (dim_out, dim_in), bias (dim_out,)).
    hidden = in_dim * up_scale
    ks = jax.random.split(key, 6)
    u = lambda k, shape, fan_in: jax.random.uniform(
        k, shape, jnp.float32, -1.0 / jnp.sqrt(fan_in), 1.0 / jnp.sqrt(fan_in))
    return {
        "w1": u(ks[0], (hidden, in_dim), in_dim),
        "b1": u(ks[1], (hidden,), in_dim),
        "w2": u(ks[2], (hidden, hidden), hidden),
        "b2": u(ks[3], (hidden,), hidden),
        "w3": u(ks[4], (out_channels, hidden), hidden),
        "b3": u(ks[5], (out_channels,), hidden),
    }


if __name__ == "__main__":
    key = jax.random.PRNGKey(0)
    kx, kp = jax.random.split(key)

    # 1000 coordinate points in R^2 (deliberately NOT a multiple of 128 to
    # exercise the padding path); tile=256 -> 4 grid steps on the padded 1024.
    N, in_dim = 1000, 2
    x = jax.random.uniform(kx, (N, in_dim), jnp.float32, -1.0, 1.0)
    params = init_params(kp, in_dim=in_dim, n_layers=3, up_scale=4, out_channels=1)

    out = inr_forward(x, params, tile=256)
    out = jax.block_until_ready(out)

    ref = inr_reference(x, params)
    assert out.shape == (N, 1), out.shape
    assert jnp.allclose(out, ref, atol=1e-4, rtol=1e-4), "mismatch vs reference"

    print("KERNEL_OK")
</pallas_src>

<mosaic_0001>
module attributes {stable_mosaic.version = 11 : i64} {
  func.func @inr_kernel(%arg0: i32, %arg1: memref<2x256xf32, #tpu.memory_space<vmem>>, %arg2: memref<8x2xf32, #tpu.memory_space<vmem>>, %arg3: memref<8x1xf32, #tpu.memory_space<vmem>>, %arg4: memref<8x8xf32, #tpu.memory_space<vmem>>, %arg5: memref<8x1xf32, #tpu.memory_space<vmem>>, %arg6: memref<1x8xf32, #tpu.memory_space<vmem>>, %arg7: memref<1x1xf32, #tpu.memory_space<vmem>>, %arg8: memref<1x256xf32, #tpu.memory_space<vmem>>) attributes {dimension_semantics = [#tpu.dimension_semantics<parallel>], iteration_bounds = array<i64: 4>, scalar_prefetch = 0 : i64, scratch_operands = 0 : i64, tpu.core_type = #tpu.core_type<tc>, window_params = [{transform_indices = @transform_0, window_bounds = array<i64: 2, 256>}, {pipeline_mode = #tpu.pipeline_mode<synchronous>, transform_indices = @transform_1, window_bounds = array<i64: 8, 2>}, {pipeline_mode = #tpu.pipeline_mode<synchronous>, transform_indices = @transform_2, window_bounds = array<i64: 8, 1>}, {pipeline_mode = #tpu.pipeline_mode<synchronous>, transform_indices = @transform_3, window_bounds = array<i64: 8, 8>}, {pipeline_mode = #tpu.pipeline_mode<synchronous>, transform_indices = @transform_4, window_bounds = array<i64: 8, 1>}, {pipeline_mode = #tpu.pipeline_mode<synchronous>, transform_indices = @transform_5, window_bounds = array<i64: 1, 8>}, {pipeline_mode = #tpu.pipeline_mode<synchronous>, transform_indices = @transform_6, window_bounds = array<i64: 1, 1>}, {transform_indices = @transform_7, window_bounds = array<i64: 1, 256>}]} {
    %c0 = arith.constant 0 : index
    %c0_0 = arith.constant 0 : index
    %0 = vector.load %arg1[%c0, %c0_0] : memref<2x256xf32, #tpu.memory_space<vmem>>, vector<2x256xf32>
    %c0_1 = arith.constant 0 : index
    %c0_2 = arith.constant 0 : index
    %1 = vector.load %arg2[%c0_1, %c0_2] : memref<8x2xf32, #tpu.memory_space<vmem>>, vector<8x2xf32>
    %cst = arith.constant dense<0.000000e+00> : vector<8x256xf32>
    %2 = tpu.matmul %1, %0, %cst {dimension_numbers = #tpu.dot_dimension_numbers<[1], [0], [0], [1], [0, 0, 1, 1], [], []>} : vector<8x2xf32>, vector<2x256xf32>, vector<8x256xf32> -> vector<8x256xf32>
    %c0_3 = arith.constant 0 : index
    %c0_4 = arith.constant 0 : index
    %3 = vector.load %arg3[%c0_3, %c0_4] : memref<8x1xf32, #tpu.memory_space<vmem>>, vector<8x1xf32>
    %4 = vector.broadcast %3 : vector<8x1xf32> to vector<8x256xf32>
    %5 = arith.addf %2, %4 : vector<8x256xf32>
    %6 = math.sin %5 : vector<8x256xf32>
    %c0_5 = arith.constant 0 : index
    %c0_6 = arith.constant 0 : index
    %7 = vector.load %arg4[%c0_5, %c0_6] : memref<8x8xf32, #tpu.memory_space<vmem>>, vector<8x8xf32>
    %cst_7 = arith.constant dense<0.000000e+00> : vector<8x256xf32>
    %8 = tpu.matmul %7, %6, %cst_7 {dimension_numbers = #tpu.dot_dimension_numbers<[1], [0], [0], [1], [0, 0, 1, 1], [], []>} : vector<8x8xf32>, vector<8x256xf32>, vector<8x256xf32> -> vector<8x256xf32>
    %c0_8 = arith.constant 0 : index
    %c0_9 = arith.constant 0 : index
    %9 = vector.load %arg5[%c0_8, %c0_9] : memref<8x1xf32, #tpu.memory_space<vmem>>, vector<8x1xf32>
    %10 = vector.broadcast %9 : vector<8x1xf32> to vector<8x256xf32>
    %11 = arith.addf %8, %10 : vector<8x256xf32>
    %12 = math.sin %11 : vector<8x256xf32>
    %c0_10 = arith.constant 0 : index
    %c0_11 = arith.constant 0 : index
    %13 = vector.load %arg6[%c0_10, %c0_11] : memref<1x8xf32, #tpu.memory_space<vmem>>, vector<1x8xf32>
    %cst_12 = arith.constant dense<0.000000e+00> : vector<1x256xf32>
    %14 = tpu.matmul %13, %12, %cst_12 {dimension_numbers = #tpu.dot_dimension_numbers<[1], [0], [0], [1], [0, 0, 1, 1], [], []>} : vector<1x8xf32>, vector<8x256xf32>, vector<1x256xf32> -> vector<1x256xf32>
    %c0_13 = arith.constant 0 : index
    %c0_14 = arith.constant 0 : index
    %15 = vector.load %arg7[%c0_13, %c0_14] : memref<1x1xf32, #tpu.memory_space<vmem>>, vector<1x1xf32>
    %16 = vector.broadcast %15 : vector<1x1xf32> to vector<1x256xf32>
    %17 = arith.addf %14, %16 : vector<1x256xf32>
    %c0_15 = arith.constant 0 : index
    %c0_16 = arith.constant 0 : index
    %18 = vector.load %arg8[%c0_15, %c0_16] : memref<1x256xf32, #tpu.memory_space<vmem>>, vector<1x256xf32>
    tpu.vector_store %arg8[%c0_15, %c0_16], %17 {strides = array<i32>} : memref<1x256xf32, #tpu.memory_space<vmem>>, vector<1x256xf32>,
    return
  }
  func.func @transform_0(%arg0: i32) -> (i32, i32) {
    %c0_i32 = arith.constant 0 : i32
    %c0_i32_0 = arith.constant 0 : i32
    return %c0_i32, %arg0 : i32, i32
  }
  func.func @transform_1(%arg0: i32) -> (i32, i32) {
    %c0_i32 = arith.constant 0 : i32
    %c0_i32_0 = arith.constant 0 : i32
    %c0_i32_1 = arith.constant 0 : i32
    return %c0_i32, %c0_i32_0 : i32, i32
  }
  func.func @transform_2(%arg0: i32) -> (i32, i32) {
    %c0_i32 = arith.constant 0 : i32
    %c0_i32_0 = arith.constant 0 : i32
    %c0_i32_1 = arith.constant 0 : i32
    return %c0_i32, %c0_i32_0 : i32, i32
  }
  func.func @transform_3(%arg0: i32) -> (i32, i32) {
    %c0_i32 = arith.constant 0 : i32
    %c0_i32_0 = arith.constant 0 : i32
    %c0_i32_1 = arith.constant 0 : i32
    return %c0_i32, %c0_i32_0 : i32, i32
  }
  func.func @transform_4(%arg0: i32) -> (i32, i32) {
    %c0_i32 = arith.constant 0 : i32
    %c0_i32_0 = arith.constant 0 : i32
    %c0_i32_1 = arith.constant 0 : i32
    return %c0_i32, %c0_i32_0 : i32, i32
  }
  func.func @transform_5(%arg0: i32) -> (i32, i32) {
    %c0_i32 = arith.constant 0 : i32
    %c0_i32_0 = arith.constant 0 : i32
    %c0_i32_1 = arith.constant 0 : i32
    return %c0_i32, %c0_i32_0 : i32, i32
  }
  func.func @transform_6(%arg0: i32) -> (i32, i32) {
    %c0_i32 = arith.constant 0 : i32
    %c0_i32_0 = arith.constant 0 : i32
    %c0_i32_1 = arith.constant 0 : i32
    return %c0_i32, %c0_i32_0 : i32, i32
  }
  func.func @transform_7(%arg0: i32) -> (i32, i32) {
    %c0_i32 = arith.constant 0 : i32
    %c0_i32_0 = arith.constant 0 : i32
    return %c0_i32, %arg0 : i32, i32
  }
}

</mosaic_0001>

<llo_original>
// kernel: tpu_custom_call.1
$region0: #{tpu_custom_call.1}
  #allocation0 [shape = 'u32[]', space=smem, size = 0x4, offset = 0x4, fixed_abs, tag = 'smem constant byte address 0x4 - core index']
  #allocation1 [shape = 'u32[144,128]{1,0:T(1,128)}', space=vmem, size = 0x12000, scoped, tag = 'internal scratch']
  #allocation2 [shape = 'f32[1,1]{1,0:T(1,128)S(1)}', space=vmem, size = 0x200, scoped, tag = 'scoped memory for tpu_custom_call.1']
  %s0 = inlined_call_operand.vmem [shape: f32[2,1024], index: 0, kind: input, shape index: {}]
  %s1 = inlined_call_operand.vmem [shape: f32[8,2], index: 1, kind: input, shape index: {}]
  %s2 = inlined_call_operand.vmem [shape: f32[8,1], index: 2, kind: input, shape index: {}]
  %s3 = inlined_call_operand.vmem [shape: f32[8,8], index: 3, kind: input, shape index: {}]
  %s4 = inlined_call_operand.vmem [shape: f32[8,1], index: 4, kind: input, shape index: {}]
  %s5 = inlined_call_operand.vmem [shape: f32[1,8], index: 5, kind: input, shape index: {}]
  %s6 = inlined_call_operand.<no memory space> [shape: f32[1,1], index: 6, kind: input, shape index: {}]
  %s7 = inlined_call_operand.hbm [shape: f32[1,1024], index: 7, kind: output, shape index: {}]
  %s8 = sld [smem:[#allocation0]]
  $region61: #{tpu_custom_call.1} parent=0
    _
  %s10 = ssub.s32 1, %s8
  %s11 = scalar_select 0, %s10, %s8
  %v12 = vstv %s6
  %13 = vst [vmem:[#allocation2] sm:$0x1] %v12
  $region1: #{tpu_custom_call.1} parent=0
    #allocation3 [shape = 'u8[2048]{0}', space=vmem, size = 0x800, scoped, tag = 'output window, operand 0']
    #allocation4 [shape = 's32[2]{0}', space=sflag, size = 0x8, scoped, tag = 'scoped memory for tpu_custom_call.1']
    %14 = vsyncpa [#allocation4], 0
    %s15 = scalar_lea.sflag [#allocation4], 1
    %16 = vsyncpa %s15, 0
    loop: start=0, step=1, limit=6
    $region2: #{tpu_custom_call.1} parent=1 // loop_pre_header
      _
    $region3: #{tpu_custom_call.1} parent=1 // loop_header
      %s18 = sphi 0, %s22
      %p19 = scmp.ge.s32.totalorder %s18, 6
      %s28 = sphi 0, %s30
      %s31 = sphi 0, %s28
      %s32 = sphi 0, %s31
      %s48 = sphi 0, %s32
      %s52 = sphi 0, %s52
      %s54 = sphi 0, %s52
      %s55 = sphi 0, %s54
      %s69 = sphi 0, %s55
      %s73 = sphi 0, %s73
      %s75 = sphi 0, %s73
      %s76 = sphi 0, %s75
      %s90 = sphi 0, %s76
      %s94 = sphi 0, %s94
      %s96 = sphi 0, %s94
      %s97 = sphi 0, %s96
      %s111 = sphi 0, %s97
      %s115 = sphi 0, %s115
      %s117 = sphi 0, %s115
      %s118 = sphi 0, %s117
      %s132 = sphi 0, %s118
      %s136 = sphi 0, %s136
      %s138 = sphi 0, %s136
      %s139 = sphi 0, %s138
      %s153 = sphi 0, %s139
      %s157 = sphi 0, %s157
      %s159 = sphi 0, %s157
      %s160 = sphi 0, %s159
      %s174 = sphi 0, %s160
      %s180 = sphi 0, %s182
      %s183 = sphi 0, %s180
      %s184 = sphi 0, %s183
      %s200 = sphi 0, %s184
    $region4: #{tpu_custom_call.1} parent=1 // loop_header_branch
      %21 = sbr.rel (%p19) target = $region8
    $region5: #{tpu_custom_call.1} parent=1 // loop_body
      %s23 = ssub.s32 %s18, 1
      %s24 = ssub.s32 %s18, 2
      %s25 = sadd.s32 %s18, 1
      %s26 = ssub.s32 %s18, %s25
      %p27 = scmp.eq.s32.totalorder %s26, 0
      %s29 = sadd.s32 %s28, 1
      %s30 = scalar_select %p27, %s28, %s29
      %p33 = pneg %p27
      %p34 = scmp.eq.s32.totalorder %s18, 3
      %p35 = por %p33, %p34
      %p36 = scmp.ne.s32.totalorder %s28, %s31
      %p37 = scmp.eq.s32.totalorder %s18, 0
      %p38 = por %p36, %p37
      %p39 = scmp.ne.s32.totalorder %s28, %s31
      %p40 = scmp.eq.s32.totalorder %s23, 3
      %p41 = por %p39, %p40
      %p42 = scmp.ne.s32.totalorder %s31, %s32
      %p43 = scmp.eq.s32.totalorder %s23, 0
      %p44 = por %p42, %p43
      %p45 = scmp.ne.s32.totalorder %s31, %s32
      %p46 = scmp.eq.s32.totalorder %s24, 3
      %p47 = por %p45, %p46
      %p49 = scmp.ne.s32.totalorder %s32, %s48
      %p50 = scmp.eq.s32.totalorder %s24, 0
      %p51 = por %p49, %p50
      %s53 = sadd.s32 %s52, 1
      %p56 = scmp.eq.s32.totalorder %s18, 3
      %p57 = scmp.ne.s32.totalorder %s52, %s54
      %p58 = scmp.eq.s32.totalorder %s18, 0
      %p59 = por %p57, %p58
      %p60 = scmp.ne.s32.totalorder %s52, %s54
      %p61 = scmp.eq.s32.totalorder %s23, 3
      %p62 = por %p60, %p61
      %p63 = scmp.ne.s32.totalorder %s54, %s55
      %p64 = scmp.eq.s32.totalorder %s23, 0
      %p65 = por %p63, %p64
      %p66 = scmp.ne.s32.totalorder %s54, %s55
      %p67 = scmp.eq.s32.totalorder %s24, 3
      %p68 = por %p66, %p67
      %p70 = scmp.ne.s32.totalorder %s55, %s69
      %p71 = scmp.eq.s32.totalorder %s24, 0
      %p72 = por %p70, %p71
      %s74 = sadd.s32 %s73, 1
      %p77 = scmp.eq.s32.totalorder %s18, 3
      %p78 = scmp.ne.s32.totalorder %s73, %s75
      %p79 = scmp.eq.s32.totalorder %s18, 0
      %p80 = por %p78, %p79
      %p81 = scmp.ne.s32.totalorder %s73, %s75
      %p82 = scmp.eq.s32.totalorder %s23, 3
      %p83 = por %p81, %p82
      %p84 = scmp.ne.s32.totalorder %s75, %s76
      %p85 = scmp.eq.s32.totalorder %s23, 0
      %p86 = por %p84, %p85
      %p87 = scmp.ne.s32.totalorder %s75, %s76
      %p88 = scmp.eq.s32.totalorder %s24, 3
      %p89 = por %p87, %p88
      %p91 = scmp.ne.s32.totalorder %s76, %s90
      %p92 = scmp.eq.s32.totalorder %s24, 0
      %p93 = por %p91, %p92
      %s95 = sadd.s32 %s94, 1
      %p98 = scmp.eq.s32.totalorder %s18, 3
      %p99 = scmp.ne.s32.totalorder %s94, %s96
      %p100 = scmp.eq.s32.totalorder %s18, 0
      %p101 = por %p99, %p100
      %p102 = scmp.ne.s32.totalorder %s94, %s96
      %p103 = scmp.eq.s32.totalorder %s23, 3
      %p104 = por %p102, %p103
      %p105 = scmp.ne.s32.totalorder %s96, %s97
      %p106 = scmp.eq.s32.totalorder %s23, 0
      %p107 = por %p105, %p106
      %p108 = scmp.ne.s32.totalorder %s96, %s97
      %p109 = scmp.eq.s32.totalorder %s24, 3
      %p110 = por %p108, %p109
      %p112 = scmp.ne.s32.totalorder %s97, %s111
      %p113 = scmp.eq.s32.totalorder %s24, 0
      %p114 = por %p112, %p113
      %s116 = sadd.s32 %s115, 1
      %p119 = scmp.eq.s32.totalorder %s18, 3
      %p120 = scmp.ne.s32.totalorder %s115, %s117
      %p121 = scmp.eq.s32.totalorder %s18, 0
      %p122 = por %p120, %p121
      %p123 = scmp.ne.s32.totalorder %s115, %s117
      %p124 = scmp.eq.s32.totalorder %s23, 3
      %p125 = por %p123, %p124
      %p126 = scmp.ne.s32.totalorder %s117, %s118
      %p127 = scmp.eq.s32.totalorder %s23, 0
      %p128 = por %p126, %p127
      %p129 = scmp.ne.s32.totalorder %s117, %s118
      %p130 = scmp.eq.s32.totalorder %s24, 3
      %p131 = por %p129, %p130
      %p133 = scmp.ne.s32.totalorder %s118, %s132
      %p134 = scmp.eq.s32.totalorder %s24, 0
      %p135 = por %p133, %p134
      %s137 = sadd.s32 %s136, 1
      %p140 = scmp.eq.s32.totalorder %s18, 3
      %p141 = scmp.ne.s32.totalorder %s136, %s138
      %p142 = scmp.eq.s32.totalorder %s18, 0
      %p143 = por %p141, %p142
      %p144 = scmp.ne.s32.totalorder %s136, %s138
      %p145 = scmp.eq.s32.totalorder %s23, 3
      %p146 = por %p144, %p145
      %p147 = scmp.ne.s32.totalorder %s138, %s139
      %p148 = scmp.eq.s32.totalorder %s23, 0
      %p149 = por %p147, %p148
      %p150 = scmp.ne.s32.totalorder %s138, %s139
      %p151 = scmp.eq.s32.totalorder %s24, 3
      %p152 = por %p150, %p151
      %p154 = scmp.ne.s32.totalorder %s139, %s153
      %p155 = scmp.eq.s32.totalorder %s24, 0
      %p156 = por %p154, %p155
      %s158 = sadd.s32 %s157, 1
      %p161 = scmp.eq.s32.totalorder %s18, 3
      %p162 = scmp.ne.s32.totalorder %s157, %s159
      %p163 = scmp.eq.s32.totalorder %s18, 0
      %p164 = por %p162, %p163
      %p165 = scmp.ne.s32.totalorder %s157, %s159
      %p166 = scmp.eq.s32.totalorder %s23, 3
      %p167 = por %p165, %p166
      %p168 = scmp.ne.s32.totalorder %s159, %s160
      %p169 = scmp.eq.s32.totalorder %s23, 0
      %p170 = por %p168, %p169
      %p171 = scmp.ne.s32.totalorder %s159, %s160
      %p172 = scmp.eq.s32.totalorder %s24, 3
      %p173 = por %p171, %p172
      %p175 = scmp.ne.s32.totalorder %s160, %s174
      %p176 = scmp.eq.s32.totalorder %s24, 0
      %p177 = por %p175, %p176
      %s178 = ssub.s32 %s18, %s25
      %p179 = scmp.eq.s32.totalorder %s178, 0
      %s181 = sadd.s32 %s180, 1
      %s182 = scalar_select %p179, %s180, %s181
      %p185 = pneg %p179
      %p186 = scmp.eq.s32.totalorder %s18, 3
      %p187 = por %p185, %p186
      %p188 = scmp.ne.s32.totalorder %s180, %s183
      %p189 = scmp.eq.s32.totalorder %s18, 0
      %p190 = por %p188, %p189
      %p191 = scmp.ne.s32.totalorder %s180, %s183
      %p192 = scmp.eq.s32.totalorder %s23, 3
      %p193 = por %p191, %p192
      %p194 = scmp.ne.s32.totalorder %s183, %s184
      %p195 = scmp.eq.s32.totalorder %s23, 0
      %p196 = por %p194, %p195
      %p197 = scmp.ne.s32.totalorder %s183, %s184
      %p198 = scmp.eq.s32.totalorder %s24, 3
      %p199 = por %p197, %p198
      %p201 = scmp.ne.s32.totalorder %s184, %s200
      %p202 = scmp.eq.s32.totalorder %s24, 0
      %p203 = por %p201, %p202
      %p204 = scmp.le.s32.totalorder 1, %s18
      %p205 = scmp.lt.s32.totalorder %s18, 5
      %p206 = pnand %p204, %p205
      %p207 = pneg %p206
      // Predicated region
      $region9: #{tpu_custom_call.1} parent=5 // pred_check
        _
      $region10: #{tpu_custom_call.1} parent=5 // pred_check_branch
        %209 = sbr.rel (%p206) target = $region12
      $region11: #{tpu_custom_call.1} parent=5 // pred_region
        %s210 = ssub.s32 %s18, 1
        // Predicated region
        $region13: #{tpu_custom_call.1} parent=11 // pred_check
          %p211 = pneg %p65
        $region14: #{tpu_custom_call.1} parent=11 // pred_check_branch
          %213 = sbr.rel (%p211) target = $region16
        $region15: #{tpu_custom_call.1} parent=11 // pred_region
          _
        $region16: #{tpu_custom_call.1} parent=11 // pred_fallthru
          _
        // Predicated region
        $region17: #{tpu_custom_call.1} parent=11 // pred_check
          %p214 = pneg %p86
        $region18: #{tpu_custom_call.1} parent=11 // pred_check_branch
          %216 = sbr.rel (%p214) target = $region20
        $region19: #{tpu_custom_call.1} parent=11 // pred_region
          _
        $region20: #{tpu_custom_call.1} parent=11 // pred_fallthru
          _
        // Predicated region
        $region21: #{tpu_custom_call.1} parent=11 // pred_check
          %p217 = pneg %p107
        $region22: #{tpu_custom_call.1} parent=11 // pred_check_branch
          %219 = sbr.rel (%p217) target = $region24
        $region23: #{tpu_custom_call.1} parent=11 // pred_region
          _
        $region24: #{tpu_custom_call.1} parent=11 // pred_fallthru
          _
        // Predicated region
        $region25: #{tpu_custom_call.1} parent=11 // pred_check
          %p220 = pneg %p128
        $region26: #{tpu_custom_call.1} parent=11 // pred_check_branch
          %222 = sbr.rel (%p220) target = $region28
        $region27: #{tpu_custom_call.1} parent=11 // pred_region
          _
        $region28: #{tpu_custom_call.1} parent=11 // pred_fallthru
          _
        // Predicated region
        $region29: #{tpu_custom_call.1} parent=11 // pred_check
          %p223 = pneg %p149
        $region30: #{tpu_custom_call.1} parent=11 // pred_check_branch
          %225 = sbr.rel (%p223) target = $region32
        $region31: #{tpu_custom_call.1} parent=11 // pred_region
          _
        $region32: #{tpu_custom_call.1} parent=11 // pred_fallthru
          _
        // Predicated region
        $region33: #{tpu_custom_call.1} parent=11 // pred_check
          %p226 = pneg %p170
        $region34: #{tpu_custom_call.1} parent=11 // pred_check_branch
          %228 = sbr.rel (%p226) target = $region36
        $region35: #{tpu_custom_call.1} parent=11 // pred_region
          _
        $region36: #{tpu_custom_call.1} parent=11 // pred_fallthru
          _
      $region12: #{tpu_custom_call.1} parent=5 // pred_fallthru
        _
      %p229 = scmp.lt.s32.totalorder %s18, 4
      // Predicated region
      $region37: #{tpu_custom_call.1} parent=5 // pred_check
        %p230 = pneg %p229
      $region38: #{tpu_custom_call.1} parent=5 // pred_check_branch
        %232 = sbr.rel (%p230) target = $region40
      $region39: #{tpu_custom_call.1} parent=5 // pred_region
        // Predicated region
        $region41: #{tpu_custom_call.1} parent=39 // pred_check
          %p233 = pneg %p38
        $region42: #{tpu_custom_call.1} parent=39 // pred_check_branch
          %235 = sbr.rel (%p233) target = $region44
        $region43: #{tpu_custom_call.1} parent=39 // pred_region
          %s236 = smul.u32 2, %s18
          %p237 = scmp.lt.s32.totalorder %s236, 7
          %s238 = scalar_select %p237, %s236, 7
          %s239 = smul.addr %s238, 2
          %s240 = scalar_lea.vmem %s0, %s239
          %s241 = smul.u32 2, %s18
        $region44: #{tpu_custom_call.1} parent=39 // pred_fallthru
          _
      $region40: #{tpu_custom_call.1} parent=5 // pred_fallthru
        _
      %p242 = scmp.le.s32.totalorder 1, %s18
      %p243 = scmp.lt.s32.totalorder %s18, 5
      %p244 = pnand %p242, %p243
      %p245 = pneg %p244
      // Predicated region
      $region45: #{tpu_custom_call.1} parent=5 // pred_check
        _
      $region46: #{tpu_custom_call.1} parent=5 // pred_check_branch
        %247 = sbr.rel (%p244) target = $region48
      $region47: #{tpu_custom_call.1} parent=5 // pred_region
        %s248 = ssub.s32 %s18, 1
        %s249 = smul.u32 2, %s23
        %p250 = scmp.lt.s32.totalorder %s249, 7
        %s251 = scalar_select %p250, %s249, 7
        %s252 = smul.addr %s251, 2
        %s253 = scalar_lea.vmem %s0, %s252
        %p254 = pneg %p44
        %p255 = pneg %p41
        %p256 = pneg %p65
        %p257 = pneg %p62
        %p258 = pneg %p86
        %p259 = pneg %p83
        %p260 = pneg %p107
        %p261 = pneg %p104
        %p262 = pneg %p128
        %p263 = pneg %p125
        %p264 = pneg %p149
        %p265 = pneg %p146
        %p266 = pneg %p170
        %p267 = pneg %p167
        %p268 = pneg %p196
        %p269 = pneg %p193
        %s270 = sand.u32 %s183, 1
        %s271 = scalar_lea.sflag [#allocation4], %s270
        %s272 = sand.u32 %s183, 1
        %s273 = smul.addr %s272, 2
        %s274 = scalar_lea.vmem [#allocation3], %s273
        %s275 = smul.u32 2, %s23
        %p276 = scmp.lt.s32.totalorder %s275, 7
        %s277 = scalar_select %p276, %s275, 7
        %s278 = smul.addr %s277, 2
        %s279 = scalar_lea.vmem %s0, %s278
        %s280 = smul.u32 2, %s23
        %s281 = smul.u32 2, %s23
        %v282 = vld [vmem:[%s279] sm:$0xf]
        %v283 = vld [vmem:[%s1] sm:$0xff]
        %v284 = vld [vmem:[%s2] sm:$0xff]
        %286 = vset.pattern.permute.xlu0 0
        %287 = vperm.xlu0 %286, %v284
        %v288 = vpop.permute.xlu0 %287
        %v292 = vunpack.c.l.s4 1983009808
        %v293 = vunpack.c.0.s8 %v292
        %v294 = vlaneseq
        %v295 = vshrl.u32 %v294, 7
        %v296 = vsub.s32 %v293, %v295
        %v297 = vrot.slane %v282, %v296
        %v298 = vcombine.high %v297, %v297
        %vm299 = vcmask 15360
        %v301 = vsel %vm299, %v283, 0
        %vm303 = vcmask 1041408
        %v304 = vsel %vm303, %v297, 0
        %v306 = vsel %vm303, %v298, 0
        %308 = vmatprep.subr.mxu0 %v306
        %309 = vmatpush1.msra.mxu0 %v304
        %310 = vmatprep.subr.mxu0 0.0
        %311 = vmatpush1.msra.mxu0 0.0
        %312 = vmatprep.subr.mxu0 0.0
        %313 = vmatpush1.msra.mxu0 0.0
        %314 = vmatprep.subr.mxu0 0.0
        %315 = vmatpush1.msra.mxu0 0.0
        %316 = vmatprep.subr.mxu0 0.0
        %317 = vmatpush1.msra.mxu0 0.0
        %318 = vmatprep.subr.mxu0 0.0
        %319 = vmatpush1.msra.mxu0 0.0
        %320 = vmatprep.subr.mxu0 0.0
        %321 = vmatpush1.msra.mxu0 0.0
        %322 = vmatprep.subr.mxu0 0.0
        %323 = vmatpush1.msra.mxu0 0.0
        %324 = vmatprep.subr.mxu0 0.0
        %325 = vmatpush1.msra.mxu0 0.0
        %326 = vmatprep.subr.mxu0 0.0
        %327 = vmatpush1.msra.mxu0 0.0
        %328 = vmatprep.subr.mxu0 0.0
        %329 = vmatpush1.msra.mxu0 0.0
        %330 = vmatprep.subr.mxu0 0.0
        %331 = vmatpush1.msra.mxu0 0.0
        %332 = vmatprep.subr.mxu0 0.0
        %333 = vmatpush1.msra.mxu0 0.0
        %334 = vmatprep.subr.mxu0 0.0
        %335 = vmatpush1.msra.mxu0 0.0
        %336 = vmatprep.subr.mxu0 0.0
        %337 = vmatpush1.msra.mxu0 0.0
        %338 = vmatprep.subr.mxu0 0.0
        %339 = vmatpush1.msra.mxu0 0.0
        %340 = vmatprep.subr.mxu0 0.0
        %341 = vmatpush1.msra.mxu0 0.0
        %342 = vmatprep.subr.mxu0 0.0
        %343 = vmatpush1.msra.mxu0 0.0
        %344 = vmatprep.subr.mxu0 0.0
        %345 = vmatpush1.msra.mxu0 0.0
        %346 = vmatprep.subr.mxu0 0.0
        %347 = vmatpush1.msra.mxu0 0.0
        %348 = vmatprep.subr.mxu0 0.0
        %349 = vmatpush1.msra.mxu0 0.0
        %350 = vmatprep.subr.mxu0 0.0
        %351 = vmatpush1.msra.mxu0 0.0
        %352 = vmatprep.subr.mxu0 0.0
        %353 = vmatpush1.msra.mxu0 0.0
        %354 = vmatprep.subr.mxu0 0.0
        %355 = vmatpush1.msra.mxu0 0.0
        %356 = vmatprep.subr.mxu0 0.0
        %357 = vmatpush1.msra.mxu0 0.0
        %358 = vmatprep.subr.mxu0 0.0
        %359 = vmatpush1.msra.mxu0 0.0
        %360 = vmatprep.subr.mxu0 0.0
        %361 = vmatpush1.msra.mxu0 0.0
        %362 = vmatprep.subr.mxu0 0.0
        %363 = vmatpush1.msra.mxu0 0.0
        %364 = vmatprep.subr.mxu0 0.0
        %365 = vmatpush1.msra.mxu0 0.0
        %366 = vmatprep.subr.mxu0 0.0
        %367 = vmatpush1.msra.mxu0 0.0
        %368 = vmatprep.subr.mxu0 0.0
        %369 = vmatpush1.msra.mxu0 0.0
        %370 = vmatprep.subr.mxu0 0.0
        %371 = vmatpush1.msra.mxu0 0.0
        %372 = vmatprep.mubr.f32.mxu0 0.0
        %373 = vmatmul.mubr.f32.gmra.mrb[0].mxu0 %v301
        %v374 = vpop.f32.mrb[0].mxu0
        %v375 = vadd.f32 %v288, %v374
        %v376 = vpop.f32.mrb[0].mxu0
        %v377 = vadd.f32 %v288, %v376
        %378 = vdwg.mxu0
        %v379 = vand.u32 2147483647, %v375
        %vm380 = vcmp.le.f32.partialorder %v379, 0.7853982
        %vm381 = vcmp.lt.s32.totalorder %v375, 0
        %v382 = vand.u32 %v375, 2139095040
        %v383 = vshrl.u32 %v382, 23
        %v384 = vsub.s32 %v383, 127
        %v385 = vand.u32 2147483647, %v375
        %v386 = vand.u32 %v385, 8388607
        %v387 = vor.u32 %v386, 8388608
        %v388 = vsub.s32 0, %v387
        %v389 = vadd.s32 %v384, 1
        %vm390 = vcmp.gt.s32.totalorder %v389, 0
        %v391 = vsel %vm390, %v389, 0
        %v392 = vshrl.u32 %v391, 5
        %v393 = vand.u32 %v391, 31
        %v394 = vsub.s32 32, %v393
        %v395 = vshrl.u32 683565275, %v394
        %v396 = vshll.u32 683565275, %v393
        %v397 = vshrl.u32 2475754826, %v394
        %v398 = vor.u32 %v396, %v397
        %v399 = vshll.u32 2475754826, %v393
        %v400 = vshrl.u32 2131351028, %v394
        %v401 = vor.u32 %v399, %v400
        %v402 = vshll.u32 2131351028, %v393
        %v403 = vshrl.u32 2102212464, %v394
        %v404 = vor.u32 %v402, %v403
        %v405 = vshll.u32 2102212464, %v393
        %v406 = vshrl.u32 920167782, %v394
        %v407 = vor.u32 %v405, %v406
        %v408 = vshll.u32 920167782, %v393
        %v409 = vshrl.u32 1326507024, %v394
        %v410 = vor.u32 %v408, %v409
        %vm411 = vcmp.lt.s32.totalorder %v392, 1
        %vm412 = vcmp.lt.s32.totalorder %v392, 2
        %vm413 = vcmp.lt.s32.totalorder %v392, 3
        %vm414 = vcmp.lt.s32.totalorder %v392, 4
        %v415 = vsel %vm411, %v395, %v398
        %v416 = vsel %vm414, %v404, 2102212464
        %v417 = vsel %vm413, %v401, %v416
        %v418 = vsel %vm412, %v415, %v417
        %v419 = vsel %vm411, %v398, %v401
        %v420 = vsel %vm414, %v407, 920167782
        %v421 = vsel %vm413, %v404, %v420
        %v422 = vsel %vm412, %v419, %v421
        %v423 = vsel %vm411, %v401, %v404
        %v424 = vsel %vm414, %v410, 1326507024
        %v425 = vsel %vm413, %v407, %v424
        %v426 = vsel %vm412, %v423, %v425
        %v427 = vshll.u32 %v387, 8
        %v428 = vmul.u32.u64.compose %v427, %v426
        %v429 = vextract.low.u32 %v428
        %v430 = vextract.high.u32 %v428
        %v431 = vmul.u32.u64.compose %v427, %v422
        %v432 = vextract.low.u32 %v431
        %v433 = vextract.high.u32 %v431
        %v434 = vmul.u32 %v427, %v418
        %v435 = vadd.s32 %v430, %v432
        %vm436 = vc.u32 %v430, %v432
        %v437 = vadd.s32 %v433, 1
        %v438 = vsel %vm436, %v437, %v433
        %v439 = vadd.s32 %v434, %v438
        %v440 = vadd.s32 %v439, 536870912
        %v441 = vshrl.u32 %v440, 30
        %v442 = vshll.u32 %v441, 30
        %v443 = vsub.s32 %v439, %v442
        %vm444 = vcmp.lt.s32.totalorder %v443, 0
        %v445 = vsub.s32 0, %v443
        %v446 = vsel %vm444, %v445, %v443
        %v447 = vclz %v446
        %v448 = vsub.s32 %v447, 2
        %vm449 = vcmp.gt.s32.totalorder 0, %v448
        %v450 = vsel %vm449, 0, %v448
        %v451 = vsub.s32 32, %v450
        %v452 = vshll.u32 %v443, %v450
        %v453 = vshrl.u32 %v435, %v451
        %v454 = vor.u32 %v452, %v453
        %v455 = vsub.s32 4294967266, %v450
        %v456 = vadd.s32 %v455, 127
        %v457 = vshll.u32 %v456, 23
        %v458 = vor.u32 4788187, %v457
        %v459 = vand.u32 2147483647, %v458
        %v461 = vcvt.s32.f32 %v454
        %v462 = vmul.f32 %v461, %v459
        %v463 = vxor.u32 %v462, 2147483648
        %v464 = vsel %vm381, %v463, %v462
        %v465 = vsub.s32 4, %v441
        %v466 = vsel %vm381, %v465, %v441
        %v467 = vsel %vm380, %v375, %v464
        %v468 = vsel %vm380, 0, %v466
        %v469 = vcosq.f32.pop %v467
        %v470 = vsinq.f32.pop %v467
        %vm471 = vweird.f32 %v375
        %v472 = vadd.s32 %v468, 3
        %v473 = vand.u32 %v472, 3
        %vm474 = vcmp.lt.s32.totalorder %v473, 2
        %vm475 = vcmp.eq.s32.totalorder %v473, 0
        %v476 = vxor.u32 %v470, 2147483648
        %v477 = vsel %vm475, %v469, %v476
        %vm478 = vcmp.eq.s32.totalorder %v473, 2
        %v479 = vxor.u32 %v469, 2147483648
        %v480 = vsel %vm478, %v479, %v470
        %v481 = vsel %vm474, %v477, %v480
        %v482 = vsel %vm471, nan, %v481
        %v483 = vand.u32 2147483647, %v377
        %vm484 = vcmp.le.f32.partialorder %v483, 0.7853982
        %vm485 = vcmp.lt.s32.totalorder %v377, 0
        %v486 = vand.u32 %v377, 2139095040
        %v487 = vshrl.u32 %v486, 23
        %v488 = vsub.s32 %v487, 127
        %v489 = vand.u32 2147483647, %v377
        %v490 = vand.u32 %v489, 8388607
        %v491 = vor.u32 %v490, 8388608
        %v492 = vsub.s32 0, %v491
        %v493 = vadd.s32 %v488, 1
        %vm494 = vcmp.gt.s32.totalorder %v493, 0
        %v495 = vsel %vm494, %v493, 0
        %v496 = vshrl.u32 %v495, 5
        %v497 = vand.u32 %v495, 31
        %v498 = vsub.s32 32, %v497
        %v499 = vshrl.u32 683565275, %v498
        %v500 = vshll.u32 683565275, %v497
        %v501 = vshrl.u32 2475754826, %v498
        %v502 = vor.u32 %v500, %v501
        %v503 = vshll.u32 2475754826, %v497
        %v504 = vshrl.u32 2131351028, %v498
        %v505 = vor.u32 %v503, %v504
        %v506 = vshll.u32 2131351028, %v497
        %v507 = vshrl.u32 2102212464, %v498
        %v508 = vor.u32 %v506, %v507
        %v509 = vshll.u32 2102212464, %v497
        %v510 = vshrl.u32 920167782, %v498
        %v511 = vor.u32 %v509, %v510
        %v512 = vshll.u32 920167782, %v497
        %v513 = vshrl.u32 1326507024, %v498
        %v514 = vor.u32 %v512, %v513
        %vm515 = vcmp.lt.s32.totalorder %v496, 1
        %vm516 = vcmp.lt.s32.totalorder %v496, 2
        %vm517 = vcmp.lt.s32.totalorder %v496, 3
        %vm518 = vcmp.lt.s32.totalorder %v496, 4
        %v519 = vsel %vm515, %v499, %v502
        %v520 = vsel %vm518, %v508, 2102212464
        %v521 = vsel %vm517, %v505, %v520
        %v522 = vsel %vm516, %v519, %v521
        %v523 = vsel %vm515, %v502, %v505
        %v524 = vsel %vm518, %v511, 920167782
        %v525 = vsel %vm517, %v508, %v524
        %v526 = vsel %vm516, %v523, %v525
        %v527 = vsel %vm515, %v505, %v508
        %v528 = vsel %vm518, %v514, 1326507024
        %v529 = vsel %vm517, %v511, %v528
        %v530 = vsel %vm516, %v527, %v529
        %v531 = vshll.u32 %v491, 8
        %v532 = vmul.u32.u64.compose %v531, %v530
        %v533 = vextract.low.u32 %v532
        %v534 = vextract.high.u32 %v532
        %v535 = vmul.u32.u64.compose %v531, %v526
        %v536 = vextract.low.u32 %v535
        %v537 = vextract.high.u32 %v535
        %v538 = vmul.u32 %v531, %v522
        %v539 = vadd.s32 %v534, %v536
        %vm540 = vc.u32 %v534, %v536
        %v541 = vadd.s32 %v537, 1
        %v542 = vsel %vm540, %v541, %v537
        %v543 = vadd.s32 %v538, %v542
        %v544 = vadd.s32 %v543, 536870912
        %v545 = vshrl.u32 %v544, 30
        %v546 = vshll.u32 %v545, 30
        %v547 = vsub.s32 %v543, %v546
        %vm548 = vcmp.lt.s32.totalorder %v547, 0
        %v549 = vsub.s32 0, %v547
        %v550 = vsel %vm548, %v549, %v547
        %v551 = vclz %v550
        %v552 = vsub.s32 %v551, 2
        %vm553 = vcmp.gt.s32.totalorder 0, %v552
        %v554 = vsel %vm553, 0, %v552
        %v555 = vsub.s32 32, %v554
        %v556 = vshll.u32 %v547, %v554
        %v557 = vshrl.u32 %v539, %v555
        %v558 = vor.u32 %v556, %v557
        %v559 = vsub.s32 4294967266, %v554
        %v560 = vadd.s32 %v559, 127
        %v561 = vshll.u32 %v560, 23
        %v562 = vor.u32 4788187, %v561
        %v563 = vand.u32 2147483647, %v562
        %v565 = vcvt.s32.f32 %v558
        %v566 = vmul.f32 %v565, %v563
        %v567 = vxor.u32 %v566, 2147483648
        %v568 = vsel %vm485, %v567, %v566
        %v569 = vsub.s32 4, %v545
        %v570 = vsel %vm485, %v569, %v545
        %v571 = vsel %vm484, %v377, %v568
        %v572 = vsel %vm484, 0, %v570
        %v573 = vcosq.f32.pop %v571
        %v574 = vsinq.f32.pop %v571
        %vm575 = vweird.f32 %v377
        %v576 = vadd.s32 %v572, 3
        %v577 = vand.u32 %v576, 3
        %vm578 = vcmp.lt.s32.totalorder %v577, 2
        %vm579 = vcmp.eq.s32.totalorder %v577, 0
        %v580 = vxor.u32 %v574, 2147483648
        %v581 = vsel %vm579, %v573, %v580
        %vm582 = vcmp.eq.s32.totalorder %v577, 2
        %v583 = vxor.u32 %v573, 2147483648
        %v584 = vsel %vm582, %v583, %v574
        %v585 = vsel %vm578, %v581, %v584
        %v586 = vsel %vm575, nan, %v585
        %v587 = vld [vmem:[%s3] sm:$0xff]
        %v588 = vld [vmem:[%s4] sm:$0xff]
        %590 = vset.pattern.permute.xlu0 0
        %591 = vperm.xlu0 %590, %v588
        %v592 = vpop.permute.xlu0 %591
        %vm594 = vcmask 64512
        %v596 = vsel %vm594, %v587, 0
        %598 = vmatprep.subr.mxu0 %v586
        %599 = vmatpush1.msra.mxu0 %v482
        %600 = vmatprep.subr.mxu0 0.0
        %601 = vmatpush1.msra.mxu0 0.0
        %602 = vmatprep.subr.mxu0 0.0
        %603 = vmatpush1.msra.mxu0 0.0
        %604 = vmatprep.subr.mxu0 0.0
        %605 = vmatpush1.msra.mxu0 0.0
        %606 = vmatprep.subr.mxu0 0.0
        %607 = vmatpush1.msra.mxu0 0.0
        %608 = vmatprep.subr.mxu0 0.0
        %609 = vmatpush1.msra.mxu0 0.0
        %610 = vmatprep.subr.mxu0 0.0
        %611 = vmatpush1.msra.mxu0 0.0
        %612 = vmatprep.subr.mxu0 0.0
        %613 = vmatpush1.msra.mxu0 0.0
        %614 = vmatprep.subr.mxu0 0.0
        %615 = vmatpush1.msra.mxu0 0.0
        %616 = vmatprep.subr.mxu0 0.0
        %617 = vmatpush1.msra.mxu0 0.0
        %618 = vmatprep.subr.mxu0 0.0
        %619 = vmatpush1.msra.mxu0 0.0
        %620 = vmatprep.subr.mxu0 0.0
        %621 = vmatpush1.msra.mxu0 0.0
        %622 = vmatprep.subr.mxu0 0.0
        %623 = vmatpush1.msra.mxu0 0.0
        %624 = vmatprep.subr.mxu0 0.0
        %625 = vmatpush1.msra.mxu0 0.0
        %626 = vmatprep.subr.mxu0 0.0
        %627 = vmatpush1.msra.mxu0 0.0
        %628 = vmatprep.subr.mxu0 0.0
        %629 = vmatpush1.msra.mxu0 0.0
        %630 = vmatprep.subr.mxu0 0.0
        %631 = vmatpush1.msra.mxu0 0.0
        %632 = vmatprep.subr.mxu0 0.0
        %633 = vmatpush1.msra.mxu0 0.0
        %634 = vmatprep.subr.mxu0 0.0
        %635 = vmatpush1.msra.mxu0 0.0
        %636 = vmatprep.subr.mxu0 0.0
        %637 = vmatpush1.msra.mxu0 0.0
        %638 = vmatprep.subr.mxu0 0.0
        %639 = vmatpush1.msra.mxu0 0.0
        %640 = vmatprep.subr.mxu0 0.0
        %641 = vmatpush1.msra.mxu0 0.0
        %642 = vmatprep.subr.mxu0 0.0
        %643 = vmatpush1.msra.mxu0 0.0
        %644 = vmatprep.subr.mxu0 0.0
        %645 = vmatpush1.msra.mxu0 0.0
        %646 = vmatprep.subr.mxu0 0.0
        %647 = vmatpush1.msra.mxu0 0.0
        %648 = vmatprep.subr.mxu0 0.0
        %649 = vmatpush1.msra.mxu0 0.0
        %650 = vmatprep.subr.mxu0 0.0
        %651 = vmatpush1.msra.mxu0 0.0
        %652 = vmatprep.subr.mxu0 0.0
        %653 = vmatpush1.msra.mxu0 0.0
        %654 = vmatprep.subr.mxu0 0.0
        %655 = vmatpush1.msra.mxu0 0.0
        %656 = vmatprep.subr.mxu0 0.0
        %657 = vmatpush1.msra.mxu0 0.0
        %658 = vmatprep.subr.mxu0 0.0
        %659 = vmatpush1.msra.mxu0 0.0
        %660 = vmatprep.subr.mxu0 0.0
        %661 = vmatpush1.msra.mxu0 0.0
        %662 = vmatprep.mubr.f32.mxu0 0.0
        %663 = vmatmul.mubr.f32.gmra.mrb[0].mxu0 %v596
        %v664 = vpop.f32.mrb[0].mxu0
        %v665 = vadd.f32 %v592, %v664
        %v666 = vpop.f32.mrb[0].mxu0
        %v667 = vadd.f32 %v592, %v666
        %668 = vdwg.mxu0
        %v669 = vand.u32 2147483647, %v665
        %vm670 = vcmp.le.f32.partialorder %v669, 0.7853982
        %vm671 = vcmp.lt.s32.totalorder %v665, 0
        %v672 = vand.u32 %v665, 2139095040
        %v673 = vshrl.u32 %v672, 23
        %v674 = vsub.s32 %v673, 127
        %v675 = vand.u32 2147483647, %v665
        %v676 = vand.u32 %v675, 8388607
        %v677 = vor.u32 %v676, 8388608
        %v678 = vsub.s32 0, %v677
        %v679 = vadd.s32 %v674, 1
        %vm680 = vcmp.gt.s32.totalorder %v679, 0
        %v681 = vsel %vm680, %v679, 0
        %v682 = vshrl.u32 %v681, 5
        %v683 = vand.u32 %v681, 31
        %v684 = vsub.s32 32, %v683
        %v685 = vshrl.u32 683565275, %v684
        %v686 = vshll.u32 683565275, %v683
        %v687 = vshrl.u32 2475754826, %v684
        %v688 = vor.u32 %v686, %v687
        %v689 = vshll.u32 2475754826, %v683
        %v690 = vshrl.u32 2131351028, %v684
        %v691 = vor.u32 %v689, %v690
        %v692 = vshll.u32 2131351028, %v683
        %v693 = vshrl.u32 2102212464, %v684
        %v694 = vor.u32 %v692, %v693
        %v695 = vshll.u32 2102212464, %v683
        %v696 = vshrl.u32 920167782, %v684
        %v697 = vor.u32 %v695, %v696
        %v698 = vshll.u32 920167782, %v683
        %v699 = vshrl.u32 1326507024, %v684
        %v700 = vor.u32 %v698, %v699
        %vm701 = vcmp.lt.s32.totalorder %v682, 1
        %vm702 = vcmp.lt.s32.totalorder %v682, 2
        %vm703 = vcmp.lt.s32.totalorder %v682, 3
        %vm704 = vcmp.lt.s32.totalorder %v682, 4
        %v705 = vsel %vm701, %v685, %v688
        %v706 = vsel %vm704, %v694, 2102212464
        %v707 = vsel %vm703, %v691, %v706
        %v708 = vsel %vm702, %v705, %v707
        %v709 = vsel %vm701, %v688, %v691
        %v710 = vsel %vm704, %v697, 920167782
        %v711 = vsel %vm703, %v694, %v710
        %v712 = vsel %vm702, %v709, %v711
        %v713 = vsel %vm701, %v691, %v694
        %v714 = vsel %vm704, %v700, 1326507024
        %v715 = vsel %vm703, %v697, %v714
        %v716 = vsel %vm702, %v713, %v715
        %v717 = vshll.u32 %v677, 8
        %v718 = vmul.u32.u64.compose %v717, %v716
        %v719 = vextract.low.u32 %v718
        %v720 = vextract.high.u32 %v718
        %v721 = vmul.u32.u64.compose %v717, %v712
        %v722 = vextract.low.u32 %v721
        %v723 = vextract.high.u32 %v721
        %v724 = vmul.u32 %v717, %v708
        %v725 = vadd.s32 %v720, %v722
        %vm726 = vc.u32 %v720, %v722
        %v727 = vadd.s32 %v723, 1
        %v728 = vsel %vm726, %v727, %v723
        %v729 = vadd.s32 %v724, %v728
        %v730 = vadd.s32 %v729, 536870912
        %v731 = vshrl.u32 %v730, 30
        %v732 = vshll.u32 %v731, 30
        %v733 = vsub.s32 %v729, %v732
        %vm734 = vcmp.lt.s32.totalorder %v733, 0
        %v735 = vsub.s32 0, %v733
        %v736 = vsel %vm734, %v735, %v733
        %v737 = vclz %v736
        %v738 = vsub.s32 %v737, 2
        %vm739 = vcmp.gt.s32.totalorder 0, %v738
        %v740 = vsel %vm739, 0, %v738
        %v741 = vsub.s32 32, %v740
        %v742 = vshll.u32 %v733, %v740
        %v743 = vshrl.u32 %v725, %v741
        %v744 = vor.u32 %v742, %v743
        %v745 = vsub.s32 4294967266, %v740
        %v746 = vadd.s32 %v745, 127
        %v747 = vshll.u32 %v746, 23
        %v748 = vor.u32 4788187, %v747
        %v749 = vand.u32 2147483647, %v748
        %v751 = vcvt.s32.f32 %v744
        %v752 = vmul.f32 %v751, %v749
        %v753 = vxor.u32 %v752, 2147483648
        %v754 = vsel %vm671, %v753, %v752
        %v755 = vsub.s32 4, %v731
        %v756 = vsel %vm671, %v755, %v731
        %v757 = vsel %vm670, %v665, %v754
        %v758 = vsel %vm670, 0, %v756
        %v759 = vcosq.f32.pop %v757
        %v760 = vsinq.f32.pop %v757
        %vm761 = vweird.f32 %v665
        %v762 = vadd.s32 %v758, 3
        %v763 = vand.u32 %v762, 3
        %vm764 = vcmp.lt.s32.totalorder %v763, 2
        %vm765 = vcmp.eq.s32.totalorder %v763, 0
        %v766 = vxor.u32 %v760, 2147483648
        %v767 = vsel %vm765, %v759, %v766
        %vm768 = vcmp.eq.s32.totalorder %v763, 2
        %v769 = vxor.u32 %v759, 2147483648
        %v770 = vsel %vm768, %v769, %v760
        %v771 = vsel %vm764, %v767, %v770
        %v772 = vsel %vm761, nan, %v771
        %v773 = vand.u32 2147483647, %v667
        %vm774 = vcmp.le.f32.partialorder %v773, 0.7853982
        %vm775 = vcmp.lt.s32.totalorder %v667, 0
        %v776 = vand.u32 %v667, 2139095040
        %v777 = vshrl.u32 %v776, 23
        %v778 = vsub.s32 %v777, 127
        %v779 = vand.u32 2147483647, %v667
        %v780 = vand.u32 %v779, 8388607
        %v781 = vor.u32 %v780, 8388608
        %v782 = vsub.s32 0, %v781
        %v783 = vadd.s32 %v778, 1
        %vm784 = vcmp.gt.s32.totalorder %v783, 0
        %v785 = vsel %vm784, %v783, 0
        %v786 = vshrl.u32 %v785, 5
        %v787 = vand.u32 %v785, 31
        %v788 = vsub.s32 32, %v787
        %v789 = vshrl.u32 683565275, %v788
        %v790 = vshll.u32 683565275, %v787
        %v791 = vshrl.u32 2475754826, %v788
        %v792 = vor.u32 %v790, %v791
        %v793 = vshll.u32 2475754826, %v787
        %v794 = vshrl.u32 2131351028, %v788
        %v795 = vor.u32 %v793, %v794
        %v796 = vshll.u32 2131351028, %v787
        %v797 = vshrl.u32 2102212464, %v788
        %v798 = vor.u32 %v796, %v797
        %v799 = vshll.u32 2102212464, %v787
        %v800 = vshrl.u32 920167782, %v788
        %v801 = vor.u32 %v799, %v800
        %v802 = vshll.u32 920167782, %v787
        %v803 = vshrl.u32 1326507024, %v788
        %v804 = vor.u32 %v802, %v803
        %vm805 = vcmp.lt.s32.totalorder %v786, 1
        %vm806 = vcmp.lt.s32.totalorder %v786, 2
        %vm807 = vcmp.lt.s32.totalorder %v786, 3
        %vm808 = vcmp.lt.s32.totalorder %v786, 4
        %v809 = vsel %vm805, %v789, %v792
        %v810 = vsel %vm808, %v798, 2102212464
        %v811 = vsel %vm807, %v795, %v810
        %v812 = vsel %vm806, %v809, %v811
        %v813 = vsel %vm805, %v792, %v795
        %v814 = vsel %vm808, %v801, 920167782
        %v815 = vsel %vm807, %v798, %v814
        %v816 = vsel %vm806, %v813, %v815
        %v817 = vsel %vm805, %v795, %v798
        %v818 = vsel %vm808, %v804, 1326507024
        %v819 = vsel %vm807, %v801, %v818
        %v820 = vsel %vm806, %v817, %v819
        %v821 = vshll.u32 %v781, 8
        %v822 = vmul.u32.u64.compose %v821, %v820
        %v823 = vextract.low.u32 %v822
        %v824 = vextract.high.u32 %v822
        %v825 = vmul.u32.u64.compose %v821, %v816
        %v826 = vextract.low.u32 %v825
        %v827 = vextract.high.u32 %v825
        %v828 = vmul.u32 %v821, %v812
        %v829 = vadd.s32 %v824, %v826
        %vm830 = vc.u32 %v824, %v826
        %v831 = vadd.s32 %v827, 1
        %v832 = vsel %vm830, %v831, %v827
        %v833 = vadd.s32 %v828, %v832
        %v834 = vadd.s32 %v833, 536870912
        %v835 = vshrl.u32 %v834, 30
        %v836 = vshll.u32 %v835, 30
        %v837 = vsub.s32 %v833, %v836
        %vm838 = vcmp.lt.s32.totalorder %v837, 0
        %v839 = vsub.s32 0, %v837
        %v840 = vsel %vm838, %v839, %v837
        %v841 = vclz %v840
        %v842 = vsub.s32 %v841, 2
        %vm843 = vcmp.gt.s32.totalorder 0, %v842
        %v844 = vsel %vm843, 0, %v842
        %v845 = vsub.s32 32, %v844
        %v846 = vshll.u32 %v837, %v844
        %v847 = vshrl.u32 %v829, %v845
        %v848 = vor.u32 %v846, %v847
        %v849 = vsub.s32 4294967266, %v844
        %v850 = vadd.s32 %v849, 127
        %v851 = vshll.u32 %v850, 23
        %v852 = vor.u32 4788187, %v851
        %v853 = vand.u32 2147483647, %v852
        %v855 = vcvt.s32.f32 %v848
        %v856 = vmul.f32 %v855, %v853
        %v857 = vxor.u32 %v856, 2147483648
        %v858 = vsel %vm775, %v857, %v856
        %v859 = vsub.s32 4, %v835
        %v860 = vsel %vm775, %v859, %v835
        %v861 = vsel %vm774, %v667, %v858
        %v862 = vsel %vm774, 0, %v860
        %v863 = vcosq.f32.pop %v861
        %v864 = vsinq.f32.pop %v861
        %vm865 = vweird.f32 %v667
        %v866 = vadd.s32 %v862, 3
        %v867 = vand.u32 %v866, 3
        %vm868 = vcmp.lt.s32.totalorder %v867, 2
        %vm869 = vcmp.eq.s32.totalorder %v867, 0
        %v870 = vxor.u32 %v864, 2147483648
        %v871 = vsel %vm869, %v863, %v870
        %vm872 = vcmp.eq.s32.totalorder %v867, 2
        %v873 = vxor.u32 %v863, 2147483648
        %v874 = vsel %vm872, %v873, %v864
        %v875 = vsel %vm868, %v871, %v874
        %v876 = vsel %vm865, nan, %v875
        %v877 = vld [vmem:[%s5] sm:$0x1]
        %v878 = vld [vmem:[#allocation2] sm:$0x1]
        %880 = vset.pattern.permute.xlu0 0
        %881 = vperm.xlu0 %880, %v878
        %v882 = vpop.permute.xlu0 %881
        %v884 = vlaneseq
        %v885 = vshrl.u32 %v884, 7
        %v886 = vsub.s32 0, %v885
        %v887 = vrot.slane %v882, %v886
        %v889 = vsel %vm594, %v877, 0
        %891 = vmatprep.subr.mxu0 %v876
        %892 = vmatpush1.msra.mxu0 %v772
        %893 = vmatprep.subr.mxu0 0.0
        %894 = vmatpush1.msra.mxu0 0.0
        %895 = vmatprep.subr.mxu0 0.0
        %896 = vmatpush1.msra.mxu0 0.0
        %897 = vmatprep.subr.mxu0 0.0
        %898 = vmatpush1.msra.mxu0 0.0
        %899 = vmatprep.subr.mxu0 0.0
        %900 = vmatpush1.msra.mxu0 0.0
        %901 = vmatprep.subr.mxu0 0.0
        %902 = vmatpush1.msra.mxu0 0.0
        %903 = vmatprep.subr.mxu0 0.0
        %904 = vmatpush1.msra.mxu0 0.0
        %905 = vmatprep.subr.mxu0 0.0
        %906 = vmatpush1.msra.mxu0 0.0
        %907 = vmatprep.subr.mxu0 0.0
        %908 = vmatpush1.msra.mxu0 0.0
        %909 = vmatprep.subr.mxu0 0.0
        %910 = vmatpush1.msra.mxu0 0.0
        %911 = vmatprep.subr.mxu0 0.0
        %912 = vmatpush1.msra.mxu0 0.0
        %913 = vmatprep.subr.mxu0 0.0
        %914 = vmatpush1.msra.mxu0 0.0
        %915 = vmatprep.subr.mxu0 0.0
        %916 = vmatpush1.msra.mxu0 0.0
        %917 = vmatprep.subr.mxu0 0.0
        %918 = vmatpush1.msra.mxu0 0.0
        %919 = vmatprep.subr.mxu0 0.0
        %920 = vmatpush1.msra.mxu0 0.0
        %921 = vmatprep.subr.mxu0 0.0
        %922 = vmatpush1.msra.mxu0 0.0
        %923 = vmatprep.subr.mxu0 0.0
        %924 = vmatpush1.msra.mxu0 0.0
        %925 = vmatprep.subr.mxu0 0.0
        %926 = vmatpush1.msra.mxu0 0.0
        %927 = vmatprep.subr.mxu0 0.0
        %928 = vmatpush1.msra.mxu0 0.0
        %929 = vmatprep.subr.mxu0 0.0
        %930 = vmatpush1.msra.mxu0 0.0
        %931 = vmatprep.subr.mxu0 0.0
        %932 = vmatpush1.msra.mxu0 0.0
        %933 = vmatprep.subr.mxu0 0.0
        %934 = vmatpush1.msra.mxu0 0.0
        %935 = vmatprep.subr.mxu0 0.0
        %936 = vmatpush1.msra.mxu0 0.0
        %937 = vmatprep.subr.mxu0 0.0
        %938 = vmatpush1.msra.mxu0 0.0
        %939 = vmatprep.subr.mxu0 0.0
        %940 = vmatpush1.msra.mxu0 0.0
        %941 = vmatprep.subr.mxu0 0.0
        %942 = vmatpush1.msra.mxu0 0.0
        %943 = vmatprep.subr.mxu0 0.0
        %944 = vmatpush1.msra.mxu0 0.0
        %945 = vmatprep.subr.mxu0 0.0
        %946 = vmatpush1.msra.mxu0 0.0
        %947 = vmatprep.subr.mxu0 0.0
        %948 = vmatpush1.msra.mxu0 0.0
        %949 = vmatprep.subr.mxu0 0.0
        %950 = vmatpush1.msra.mxu0 0.0
        %951 = vmatprep.subr.mxu0 0.0
        %952 = vmatpush1.msra.mxu0 0.0
        %953 = vmatprep.subr.mxu0 0.0
        %954 = vmatpush1.msra.mxu0 0.0
        %955 = vmatprep.mubr.f32.mxu0 0.0
        %956 = vmatmul.mubr.f32.gmra.mrb[0].mxu0 %v889
        %v957 = vpop.f32.mrb[0].mxu0
        %v958 = vadd.f32 %v887, %v957
        %v959 = vpop.f32.mrb[0].mxu0
        %v960 = vadd.f32 %v887, %v959
        %961 = vdwg.mxu0
        %v964 = vcombine.low %v958, %v960
        %v966 = vunpack.c.l.s4 1966171168
        %v967 = vunpack.c.0.s8 %v966
        %v968 = vlaneseq
        %v969 = vshrl.u32 %v968, 7
        %v970 = vsub.s32 %v967, %v969
        %v971 = vrot.slane %v964, %v970
        %v973 = vunpack.c.l.s4 1966171168
        %v974 = vunpack.c.0.s8 %v973
        %v975 = vlaneseq
        %v976 = vshrl.u32 %v975, 7
        %v977 = vsub.s32 %v974, %v976
        %v978 = vrot.slane %v971, %v977
        %v980 = vlaneseq
        %vm981 = vcmp.ge.s32.totalorder %v980, 0
        %vm982 = vcmp.lt.s32.totalorder %v980, 256
        %vm983 = vmand %vm981, %vm982
        %984 = vst.msk [vmem:[%s274] sm:$0x3] %vm983, %v978
        %s985 = sand.u32 %s183, 1
        %s986 = scalar_lea.sflag [#allocation4], %s985
        %s987 = sand.u32 %s183, 1
        %s988 = smul.addr %s987, 2
        %s989 = scalar_lea.vmem [#allocation3], %s988
        // Predicated region
        $region49: #{tpu_custom_call.1} parent=47 // pred_check
          %p990 = pneg %p193
        $region50: #{tpu_custom_call.1} parent=47 // pred_check_branch
          %992 = sbr.rel (%p990) target = $region52
        $region51: #{tpu_custom_call.1} parent=47 // pred_region
          %s993 = smul.u32 2, %s23
          %s995 = ssub.s32 32, 32
          %996 = vsyncadd %s986, %s995
          %s997 = smul.addr %s993, 16
          %s998 = scalar_lea.hbm %s7, %s997
          %s1000 = sshll.u32 %s989, 4
          %s1001 = int_to_ptr.vmem [resolvable:$true] %s1000
          %1003 = dma.vmem_to_hbm [thread:$0]  %s1001, 32, %s998, %s986
        $region52: #{tpu_custom_call.1} parent=47 // pred_fallthru
          _
      $region48: #{tpu_custom_call.1} parent=5 // pred_fallthru
        _
      %p1004 = scmp.le.s32.totalorder 2, %s18
      // Predicated region
      $region53: #{tpu_custom_call.1} parent=5 // pred_check
        %p1005 = pneg %p1004
      $region54: #{tpu_custom_call.1} parent=5 // pred_check_branch
        %1007 = sbr.rel (%p1005) target = $region56
      $region55: #{tpu_custom_call.1} parent=5 // pred_region
        %s1008 = ssub.s32 %s18, 2
        // Predicated region
        $region57: #{tpu_custom_call.1} parent=55 // pred_check
          %p1009 = pneg %p199
        $region58: #{tpu_custom_call.1} parent=55 // pred_check_branch
          %1011 = sbr.rel (%p1009) target = $region60
        $region59: #{tpu_custom_call.1} parent=55 // pred_region
          %s1012 = sand.u32 %s184, 1
          %s1013 = scalar_lea.sflag [#allocation4], %s1012
          %s1014 = sand.u32 %s184, 1
          %s1015 = smul.addr %s1014, 2
          %s1016 = scalar_lea.vmem [#allocation3], %s1015
          %1017 = dma.done %s1013, 32
        $region60: #{tpu_custom_call.1} parent=55 // pred_fallthru
          _
      $region56: #{tpu_custom_call.1} parent=5 // pred_fallthru
        _
    $region6: #{tpu_custom_call.1} parent=1 // loop_footer
      %s22 = sadd.s32 1, %s18
    $region7: #{tpu_custom_call.1} parent=1 // loop_footer_branch
      %17 = sbr.rel target = $region3
    $region8: #{tpu_custom_call.1} parent=1 // loop_exit
      _
    %1018 = vsyncpa [#allocation4], 1
    %s1019 = scalar_lea.sflag [#allocation4], 1
    %1020 = vsyncpa %s1019, 1

</llo_original>
